<compile_context>
chip_gen: v5e
topology: v5e:2x2
jax: 0.10.0
libtpu: 0.0.40
codegen_flags: <defaults>
</compile_context>

<pallas_src>
import functools

import jax
import jax.numpy as jnp
from jax.experimental import pallas as pl
from jax.experimental.pallas import tpu as pltpu


# ----------------------------------------------------------------------------
# Tiny irreps helper (replaces o3.Irreps just to get dimensions).
# "4x0e+2x1o" -> [(4, 0), (2, 1)] ; dim = sum(mul * (2l + 1))
# ----------------------------------------------------------------------------
def parse_irreps(s):
    out = []
    for tok in s.split("+"):
        tok = tok.strip()
        mul_s, ir = tok.split("x")
        l = int(ir[:-1])  # strip parity ('e'/'o'); irrelevant for dims
        out.append((int(mul_s), l))
    return out


def irreps_dim(irreps):
    return sum(mul * (2 * l + 1) for mul, l in irreps)


# ----------------------------------------------------------------------------
# Tile-size / VMEM budgeting helpers.
# ----------------------------------------------------------------------------
_LANE = 128


def _lane_pad(d):
    # Feature axes occupy full 128-lane vregs in VMEM regardless of d.
    return pl.cdiv(max(int(d), 1), _LANE) * _LANE


def _vmem_capacity_bytes():
    """Per-core VMEM capacity; conservative fallback if no TPU info."""
    try:
        return int(pltpu.get_tpu_info().vmem_capacity_bytes)
    except Exception:
        return 64 << 20  # v7x per-TC size — safe lower bound everywhere


def _choose_tile_n(N, D, out_dims, dtype, vmem_cap):
    """Pick a batch tile sized against the double-buffered VMEM footprint."""
    itemsize = jnp.dtype(dtype).itemsize
    sublane = max(8, 32 // itemsize)          # 8 rows f32, 16 bf16, 32 int8/fp8

    # (1 input + num_outputs) arrays x 2 pipeline buffers, lane-padded widths.
    bytes_per_row = (_lane_pad(D) + sum(_lane_pad(d) for d in out_dims)) * itemsize * 2

    big_vmem = vmem_cap >= (100 << 20)        # v5e / v6e: 128 MiB physical
    budget = (40 << 20) if big_vmem else (24 << 20)   # v7x: stay well under 64 MiB/TC
    max_tile = 16384 if big_vmem else 8192

    tile = budget // bytes_per_row
    tile = max(sublane, (tile // sublane) * sublane)
    tile = min(tile, max_tile)
    tile = min(tile, pl.cdiv(N, sublane) * sublane)

    # Even grid partitioning: when there is enough work for >= 2 tiles, force
    # an even number of grid steps so v7x's 2 TensorCores both get work.
    if N > 2 * sublane:
        steps = pl.cdiv(N, tile)
        if steps < 2:
            steps = 2
        elif steps % 2 == 1:
            steps += 1
        tile = min(tile, pl.cdiv(pl.cdiv(N, steps), sublane) * sublane)
        tile = max(tile, sublane)

    return int(tile), bytes_per_row


# ----------------------------------------------------------------------------
# Pallas kernel: split the feature axis into contiguous chunks.
# ----------------------------------------------------------------------------
def _sortcut_kernel(x_ref, *out_refs, dims):
    # x_ref: (tile_n, D) in VMEM; out_refs[i]: (tile_n, dims[i]) in VMEM.
    # Static slices; when offsets/dims are 128-aligned this is a pure
    # sublane-wise copy with full-lane stores (no XLU rotate, no vst.msk).
    off = 0
    for o_ref, d in zip(out_refs, dims):
        o_ref[...] = x_ref[:, off:off + d]
        off += d


def _sortcut_pallas(x, out_dims, tile_n):
    N, D = x.shape
    itemsize = jnp.dtype(x.dtype).itemsize

    vmem_cap = _vmem_capacity_bytes()
    if tile_n is None:
        tile_n, bytes_per_row = _choose_tile_n(N, D, out_dims, x.dtype, vmem_cap)
    else:
        _, bytes_per_row = _choose_tile_n(N, D, out_dims, x.dtype, vmem_cap)
        tile_n = int(tile_n)

    # Ragged last block handled by Pallas (OOB input reads padded, OOB output
    # writes dropped) — no divisibility requirement on N.
    grid = (pl.cdiv(N, tile_n),)

    in_spec = pl.BlockSpec((tile_n, D), lambda i: (i, 0))
    out_specs = [pl.BlockSpec((tile_n, d), lambda i: (i, 0)) for d in out_dims]
    out_shapes = [jax.ShapeDtypeStruct((N, d), x.dtype) for d in out_dims]

    kernel = functools.partial(_sortcut_kernel, dims=tuple(out_dims))

    # Scoped-VMEM limit: working set + 50% headroom.  The cap can never fall
    # below the working set (so explicit large tile_n never causes an
    # allocation failure), and never exceeds physical per-core VMEM.
    working_set = bytes_per_row * tile_n
    vmem_limit = int(max(working_set * 3 // 2, 4 << 20))
    vmem_limit = int(min(vmem_limit, vmem_cap))

    cost = pl.CostEstimate(
        flops=0,
        transcendentals=0,
        bytes_accessed=2 * N * D * itemsize,   # read x once, write all chunks
    )

    return pl.pallas_call(
        kernel,
        grid=grid,
        in_specs=[in_spec],
        out_specs=tuple(out_specs),
        out_shape=tuple(out_shapes),
        compiler_params=pltpu.CompilerParams(
            dimension_semantics=("parallel",),
            vmem_limit_bytes=vmem_limit,
        ),
        cost_estimate=cost,
    )(x)


def sortcut_forward(x, out_dims, *, tile_n=None, use_pallas=None):
    """_Sortcut.forward: split x:[N, D] into ([N, d_0], [N, d_1], ...).

    use_pallas=None (auto): Pallas path only when the feature chunks are wide
    enough (>= 128 lanes) to benefit; tiny e3nn dims fall back to a fused XLA
    slice, which already hits the HBM roofline for this memory-bound split.
    """
    N, D = x.shape
    out_dims = tuple(int(d) for d in out_dims)
    assert D == sum(out_dims), (D, out_dims)

    if use_pallas is None:
        use_pallas = max(out_dims) >= _LANE

    if not use_pallas:
        # Fused XLA slices: lane-dense, no padding waste, no per-step overhead.
        outs, off = [], 0
        for d in out_dims:
            outs.append(jax.lax.slice_in_dim(x, off, off + d, axis=1))
            off += d
        return tuple(outs)

    return _sortcut_pallas(x, out_dims, tile_n)


# ----------------------------------------------------------------------------
# Module-equivalent wrapper
# ----------------------------------------------------------------------------
class SortcutPallas:
    def __init__(self, *irreps_outs):
        self.irreps_outs = tuple(parse_irreps(s) for s in irreps_outs)
        self.out_dims = tuple(irreps_dim(ir) for ir in self.irreps_outs)
        self.irreps_in_dim = sum(self.out_dims)

    def __call__(self, x, **kw):
        return sortcut_forward(x, self.out_dims, **kw)


# ----------------------------------------------------------------------------
# Self-test
# ----------------------------------------------------------------------------
def _check(x, out_dims, **kw):
    outs = jax.block_until_ready(sortcut_forward(x, out_dims, **kw))
    off, ok = 0, True
    for o, d in zip(outs, out_dims):
        ref = x[:, off:off + d]
        off += d
        ok = ok and bool(jnp.array_equal(o, ref))          # exact: pure copy
        ok = ok and (o.shape == ref.shape) and (o.dtype == ref.dtype)
    return ok


if __name__ == "__main__":
    ok = True

    # e3nn-style module (_Sortcut("4x0e+2x1o", "2x0e+1x1o")): dims 10, 5 -> D=15.
    module = SortcutPallas("4x0e+2x1o", "2x0e+1x1o")
    D = module.irreps_in_dim

    # Case 1: tiny feature dims, auto dispatch -> fused XLA slice path.
    x1 = jax.random.normal(jax.random.PRNGKey(0), (16, D), dtype=jnp.float32)
    ok = ok and _check(x1, module.out_dims)

    # Case 2: same tiny dims forced through the Pallas kernel (compile check).
    ok = ok and _check(x1, module.out_dims, use_pallas=True)

    # Case 3: ragged batch through the Pallas kernel (cdiv grid, dropped OOB writes).
    x2 = jax.random.normal(jax.random.PRNGKey(1), (37, D), dtype=jnp.float32)
    ok = ok and _check(x2, module.out_dims, use_pallas=True)

    # Case 4: wide, 128-aligned chunks, auto dispatch -> Pallas lane-dense path.
    wide_dims = (256, 128)
    xw = jax.random.normal(jax.random.PRNGKey(2), (64, sum(wide_dims)),
                           dtype=jnp.float32)
    ok = ok and _check(xw, wide_dims)

    if ok:
        print("KERNEL_OK")
    else:
        raise SystemExit("mismatch vs reference split")
</pallas_src>

<mosaic_0001>
module attributes {stable_mosaic.version = 11 : i64} {
  func.func @_sortcut_kernel(%arg0: i32, %arg1: memref<16x15xf32, #tpu.memory_space<vmem>>, %arg2: memref<16x10xf32, #tpu.memory_space<vmem>>, %arg3: memref<16x5xf32, #tpu.memory_space<vmem>>) attributes {dimension_semantics = [#tpu.dimension_semantics<parallel>], iteration_bounds = array<i64: 1>, scalar_prefetch = 0 : i64, scratch_operands = 0 : i64, tpu.core_type = #tpu.core_type<tc>, window_params = [{transform_indices = @transform_0, window_bounds = array<i64: 16, 15>}, {transform_indices = @transform_1, window_bounds = array<i64: 16, 10>}, {transform_indices = @transform_2, window_bounds = array<i64: 16, 5>}]} {
    %c0 = arith.constant 0 : index
    %c0_0 = arith.constant 0 : index
    %0 = vector.load %arg1[%c0, %c0_0] : memref<16x15xf32, #tpu.memory_space<vmem>>, vector<16x10xf32>
    %c0_1 = arith.constant 0 : index
    %c0_2 = arith.constant 0 : index
    %1 = vector.load %arg2[%c0_1, %c0_2] : memref<16x10xf32, #tpu.memory_space<vmem>>, vector<16x10xf32>
    tpu.vector_store %arg2[%c0_1, %c0_2], %0 {strides = array<i32>} : memref<16x10xf32, #tpu.memory_space<vmem>>, vector<16x10xf32>,
    %c0_3 = arith.constant 0 : index
    %c10 = arith.constant 10 : index
    %2 = vector.load %arg1[%c0_3, %c10] : memref<16x15xf32, #tpu.memory_space<vmem>>, vector<16x5xf32>
    %c0_4 = arith.constant 0 : index
    %c0_5 = arith.constant 0 : index
    %3 = vector.load %arg3[%c0_4, %c0_5] : memref<16x5xf32, #tpu.memory_space<vmem>>, vector<16x5xf32>
    tpu.vector_store %arg3[%c0_4, %c0_5], %2 {strides = array<i32>} : memref<16x5xf32, #tpu.memory_space<vmem>>, vector<16x5xf32>,
    return
  }
  func.func @transform_0(%arg0: i32) -> (i32, i32) {
    %c0_i32 = arith.constant 0 : i32
    %c0_i32_0 = arith.constant 0 : i32
    return %arg0, %c0_i32 : i32, i32
  }
  func.func @transform_1(%arg0: i32) -> (i32, i32) {
    %c0_i32 = arith.constant 0 : i32
    %c0_i32_0 = arith.constant 0 : i32
    return %arg0, %c0_i32 : i32, i32
  }
  func.func @transform_2(%arg0: i32) -> (i32, i32) {
    %c0_i32 = arith.constant 0 : i32
    %c0_i32_0 = arith.constant 0 : i32
    return %arg0, %c0_i32 : i32, i32
  }
}

</mosaic_0001>

<llo_original>
// kernel: tpu_custom_call.1
$region0: #{tpu_custom_call.1}
  #allocation0 [shape = 'u32[]', space=smem, size = 0x4, offset = 0x4, fixed_abs, tag = 'smem constant byte address 0x4 - core index']
  #allocation1 [shape = 'u32[72,128]{1,0:T(1,128)}', space=vmem, size = 0x9000, scoped, tag = 'internal scratch']
  %s0 = inlined_call_operand.hbm [shape: f32[16,15], index: 0, kind: input, shape index: {}]
  %s1 = inlined_call_operand.hbm [shape: f32[16,10], index: 1, kind: output, shape index: {0}]
  %s2 = inlined_call_operand.vmem [shape: f32[16,5], index: 2, kind: output, shape index: {1}]
  %3 = xla_tuple %s1, %s2
  %s4 = sld [smem:[#allocation0]]
  $region26: #{tpu_custom_call.1} parent=0
    _
  %s6 = ssub.s32 1, %s4
  %s7 = scalar_select 0, %s6, %s4
  $region1: #{tpu_custom_call.1} parent=0
    #allocation2 [shape = 'u8[8192]{0}', space=vmem, size = 0x2000, scoped, tag = 'input window, operand 0, single buffered']
    #allocation3 [shape = 's32[1]{0}', space=sflag, size = 0x4, scoped, tag = 'scoped memory for tpu_custom_call.1']
    #allocation4 [shape = 's32[1]{0}', space=sflag, size = 0x4, scoped, tag = 'scoped memory for tpu_custom_call.1']
    #allocation5 [shape = 'u8[8192]{0}', space=vmem, size = 0x2000, scoped, tag = 'output window, operand 0, single buffered']
    %8 = vsyncpa [#allocation3], 0
    %9 = vsyncpa [#allocation4], 0
    // Predicated region
    $region2: #{tpu_custom_call.1} parent=1 // pred_check
      _
    $region3: #{tpu_custom_call.1} parent=1 // pred_check_branch
      %11 = sbr.rel (0) target = $region5
    $region4: #{tpu_custom_call.1} parent=1 // pred_region
      %13 = vsyncadd [#allocation3], 0
      %s14 = sshll.u32 %s0, 4
      %s15 = int_to_ptr.hbm [resolvable:$true] %s14
      %s16 = sshll.u32 [#allocation2], 4
      %s17 = int_to_ptr.vmem [resolvable:$true] %s16
      %22 = dma.hbm_to_vmem [thread:$0]  %s15, 256, %s17, [#allocation3], 128, 128, 8
    $region5: #{tpu_custom_call.1} parent=1 // pred_fallthru
      _
    // Predicated region
    $region6: #{tpu_custom_call.1} parent=1 // pred_check
      _
    $region7: #{tpu_custom_call.1} parent=1 // pred_check_branch
      %24 = sbr.rel (0) target = $region9
    $region8: #{tpu_custom_call.1} parent=1 // pred_region
      %26 = dma.done [#allocation3], 256
    $region9: #{tpu_custom_call.1} parent=1 // pred_fallthru
      _
    %v27 = vld [vmem:[#allocation2] sm:$0xff]
    %v28 = vld [vmem:[#allocation2 + $0x8] sm:$0xff]
    %vm29 = vcmask 80896
    %30 = vst.msk [vmem:[#allocation5] sm:$0xff] %vm29, %v27
    %31 = vst.msk [vmem:[#allocation5 + $0x8] sm:$0xff] %vm29, %v28
    %v32 = vld [vmem:[#allocation2] sm:$0xff]
    %v33 = vld [vmem:[#allocation2 + $0x8] sm:$0xff]
    %36 = vrot.lane.b32.xlu0 %v32, 118
    %v37 = vpop.permute.xlu0 %36
    %38 = vrot.lane.b32.xlu0 %v33, 118
    %v39 = vpop.permute.xlu0 %38
    %vm42 = vcmask 39936
    %43 = vst.msk [vmem:[%s2] sm:$0xff] %vm42, %v37
    %44 = vst.msk [vmem:[%s2 + $0x8] sm:$0xff] %vm42, %v39
    // Predicated region
    $region10: #{tpu_custom_call.1} parent=1 // pred_check
      _
    $region11: #{tpu_custom_call.1} parent=1 // pred_check_branch
      %46 = sbr.rel (0) target = $region13
    $region12: #{tpu_custom_call.1} parent=1 // pred_region
      %48 = vsyncadd [#allocation4], 0
      %s49 = sshll.u32 [#allocation5], 4
      %s50 = int_to_ptr.vmem [resolvable:$true] %s49
      %s51 = sshll.u32 %s1, 4
      %s52 = int_to_ptr.hbm [resolvable:$true] %s51
      %57 = dma.vmem_to_hbm [thread:$0]  %s50, 256, %s52, [#allocation4], 128, 128, 8
    $region13: #{tpu_custom_call.1} parent=1 // pred_fallthru
      _
    // Predicated region
    $region14: #{tpu_custom_call.1} parent=1 // pred_check
      _
    $region15: #{tpu_custom_call.1} parent=1 // pred_check_branch
      %59 = sbr.rel (0) target = $region17
    $region16: #{tpu_custom_call.1} parent=1 // pred_region
      _
    $region17: #{tpu_custom_call.1} parent=1 // pred_fallthru
      _
    // Predicated region
    $region18: #{tpu_custom_call.1} parent=1 // pred_check
      _
    $region19: #{tpu_custom_call.1} parent=1 // pred_check_branch
      %61 = sbr.rel (0) target = $region21
    $region20: #{tpu_custom_call.1} parent=1 // pred_region
      %63 = dma.done [#allocation4], 256
    $region21: #{tpu_custom_call.1} parent=1 // pred_fallthru
      _
    // Predicated region
    $region22: #{tpu_custom_call.1} parent=1 // pred_check
      _
    $region23: #{tpu_custom_call.1} parent=1 // pred_check_branch
      %65 = sbr.rel (0) target = $region25
    $region24: #{tpu_custom_call.1} parent=1 // pred_region
      _
    $region25: #{tpu_custom_call.1} parent=1 // pred_fallthru
      _
    %66 = vsyncpa [#allocation3], 1
    %67 = vsyncpa [#allocation4], 1

</llo_original>
